<compile_context>
chip_gen: v7x
topology: tpu7x:2x2x1
jax: 0.10.0
libtpu: 0.0.40
codegen_flags: <defaults>
</compile_context>

<pallas_src>
import functools
import math

import numpy as np
import jax
import jax.numpy as jnp
from jax.experimental import pallas as pl
from jax.experimental.pallas import tpu as pltpu

_HID = 128                                   # hidden_size fixed to 128 in the module
_LANES = 128                                 # TPU lane width
_LOG_SQRT_2PI = math.log(math.sqrt(2.0 * math.pi))


def _round_up(v, m):
    return ((v + m - 1) // m) * m


# ----------------------------------------------------------------------------
# Pallas kernel: fused MLP base + DiagGaussian head (mean + log_prob)
# ----------------------------------------------------------------------------
def model_kernel(x_ref, y_ref, w_ref, c_ref, out_ref, *,
                 in_pad, d_out, out_lanes, mm_dtype):
    """Writes one lane-dense (tile_b, out_lanes) f32 slab:
         lanes [0, d_out) -> mean (dist.mode())
         lane  d_out      -> log_prob(y).sum(-1)
         remaining lanes  -> 0
    """
    H = _HID
    # Packed weight slab: rows [0, in_pad) = W1, then W2, W3, Wmean (zero-padded cols).
    w1 = w_ref[0:in_pad, :]
    w2 = w_ref[in_pad:in_pad + H, :]
    w3 = w_ref[in_pad + H:in_pad + 2 * H, :]
    wm = w_ref[in_pad + 2 * H:in_pad + 3 * H, :]
    # Packed constants slab (f32): biases + hoisted Gaussian constants.
    b1 = c_ref[0:1, :]
    b2 = c_ref[1:2, :]
    b3 = c_ref[2:3, :]
    bm = c_ref[3:4, :]
    niv = c_ref[4:5, 0:d_out]          # -1 / (2 * std^2)
    cgs = c_ref[5:6, 0:d_out]          # -(logstd + log(sqrt(2*pi)))

    x = x_ref[...].astype(mm_dtype)    # already bf16 from the wrapper (no-op cast)
    h = jnp.maximum(jnp.dot(x, w1, preferred_element_type=jnp.float32) + b1, 0.0)
    h = jnp.maximum(
        jnp.dot(h.astype(mm_dtype), w2, preferred_element_type=jnp.float32) + b2, 0.0)
    h = jnp.maximum(
        jnp.dot(h.astype(mm_dtype), w3, preferred_element_type=jnp.float32) + b3, 0.0)
    # Mean head; lanes >= d_out are exactly 0 because wm/bm are zero-padded.
    mean_full = jnp.dot(h.astype(mm_dtype), wm,
                        preferred_element_type=jnp.float32) + bm        # (tb, 128)

    # FixedNormal(mean, std).log_prob(y).sum(-1): f32 residual on narrow lanes,
    # constants hoisted -> no exp / divide in the kernel.
    d = y_ref[...] - mean_full[:, 0:d_out]                              # (tb, d_out)
    lp = jnp.sum(d * d * niv + cgs, axis=-1, keepdims=True)             # (tb, 1)

    mean_nar = mean_full[:, 0:out_lanes]                                # (tb, out_lanes)
    lane = jax.lax.broadcasted_iota(jnp.int32, mean_nar.shape, 1)
    out_ref[...] = jnp.where(lane == d_out, lp, mean_nar)


# ----------------------------------------------------------------------------
# Parameter packing — done ONCE per parameter set, outside the hot path
# ----------------------------------------------------------------------------
def pack_params(params, matmul_dtype=jnp.bfloat16):
    (w1, b1, w2, b2, w3, b3, wm, bm, logstd) = params
    num_inputs = w1.shape[0]
    d_out = wm.shape[1]
    assert w1.shape[1] == _HID and wm.shape[0] == _HID
    assert d_out + 1 <= _LANES, "packed-output path assumes num_outputs < 128"

    in_pad = _round_up(num_inputs, 16)                  # bf16 sublane alignment
    out_lanes = min(_LANES, _round_up(d_out + 1, 32))   # narrow output slab

    # One packed weight slab (single, grid-invariant DMA stream).
    w_packed = jnp.concatenate([
        jnp.pad(jnp.asarray(w1, jnp.float32), ((0, in_pad - num_inputs), (0, 0))),
        jnp.asarray(w2, jnp.float32),
        jnp.asarray(w3, jnp.float32),
        jnp.pad(jnp.asarray(wm, jnp.float32), ((0, 0), (0, _LANES - d_out))),
    ], axis=0).astype(matmul_dtype)

    # One packed constants slab: 3 hidden biases, mean bias, and the two
    # precomputed Gaussian constants (so the kernel has no exp / divide).
    def pad_lane(v):
        v = jnp.asarray(v, jnp.float32).reshape(1, -1)
        return jnp.pad(v, ((0, 0), (0, _LANES - v.shape[1])))

    logstd_f = jnp.asarray(logstd, jnp.float32)
    niv = -0.5 * jnp.exp(-2.0 * logstd_f)               # == -1 / (2 * std^2)
    cgs = -(logstd_f + _LOG_SQRT_2PI)
    consts = jnp.concatenate([
        pad_lane(b1), pad_lane(b2), pad_lane(b3), pad_lane(bm),
        pad_lane(niv), pad_lane(cgs),
        jnp.zeros((2, _LANES), jnp.float32),
    ], axis=0)                                          # (8, 128) f32

    meta = dict(num_inputs=num_inputs, in_pad=in_pad, d_out=d_out,
                out_lanes=out_lanes, matmul_dtype=matmul_dtype)
    return w_packed, consts, meta


# ----------------------------------------------------------------------------
# Hot-path wrapper (jitted): pad activations, run the fused kernel, slice out.
# ----------------------------------------------------------------------------
@functools.partial(jax.jit, static_argnames=(
    "num_inputs", "in_pad", "d_out", "out_lanes", "tile_b", "matmul_dtype"))
def run_model(x, y, w_packed, consts, *, num_inputs, in_pad, d_out, out_lanes,
              tile_b=None, matmul_dtype=jnp.bfloat16):
    """Returns (mean, log_prob).  mean == predict(deterministic=True),
    log_prob == evaluate(inputs, y)."""
    B, nin = x.shape
    assert nin == num_inputs and y.shape == (B, d_out)

    # Batch tiling: >=2 roughly balanced parallel steps (v7x dual TensorCore),
    # capped at 4096 rows/step so each step's DMA chunk sits near the HBM
    # roofline on v5e/v6e while staying at a few MB of VMEM.
    if tile_b is None:
        n_steps = max(2, pl.cdiv(B, 4096))
        tile_b = _round_up(pl.cdiv(B, n_steps), 16)
    tile_b = max(16, _round_up(tile_b, 16))             # bf16 sublane packing
    B_pad = _round_up(B, tile_b)
    grid = (B_pad // tile_b,)

    # x goes in already as bf16 (kernel casts anyway -> bit-identical, half DMA).
    x_in = x.astype(matmul_dtype)
    if B_pad != B or in_pad != nin:
        x_in = jnp.pad(x_in, ((0, B_pad - B), (0, in_pad - nin)))
    # y stays f32 and narrow (d_out lanes) for an f32 residual.
    y_in = y.astype(jnp.float32)
    if B_pad != B:
        y_in = jnp.pad(y_in, ((0, B_pad - B), (0, 0)))

    kernel = functools.partial(model_kernel, in_pad=in_pad, d_out=d_out,
                               out_lanes=out_lanes, mm_dtype=matmul_dtype)

    out = pl.pallas_call(
        kernel,
        out_shape=jax.ShapeDtypeStruct((B_pad, out_lanes), jnp.float32),
        grid_spec=pltpu.PrefetchScalarGridSpec(
            num_scalar_prefetch=0,
            grid=grid,
            in_specs=[
                pl.BlockSpec((tile_b, in_pad), lambda i: (i, 0)),    # x (bf16)
                pl.BlockSpec((tile_b, d_out), lambda i: (i, 0)),     # y (narrow f32)
                pl.BlockSpec(w_packed.shape, lambda i: (0, 0)),      # weight slab
                pl.BlockSpec(consts.shape, lambda i: (0, 0)),        # constants slab
            ],
            out_specs=pl.BlockSpec((tile_b, out_lanes), lambda i: (i, 0)),
        ),
        compiler_params=pltpu.CompilerParams(
            dimension_semantics=("parallel",)),
    )(x_in, y_in, w_packed, consts)

    mean = out[:B, :d_out]
    log_prob = out[:B, d_out:d_out + 1]
    return mean, log_prob


# ----------------------------------------------------------------------------
# Deterministic parameter init (mirrors orthogonal_ with gain sqrt(2), bias 0)
# ----------------------------------------------------------------------------
def orthogonal_linear(key, fan_in, fan_out, gain):
    # nn.init.orthogonal_ on weight of shape (out, in); we return the
    # transposed (in, out) matrix used by the kernel's x @ W convention.
    a = jax.random.normal(key, (fan_out, fan_in), dtype=jnp.float32)
    q, r = jnp.linalg.qr(a.T if fan_out < fan_in else a)
    q = q * jnp.sign(jnp.diag(r))
    if fan_out < fan_in:
        q = q.T
    w_out_in = gain * q[:fan_out, :fan_in]
    return w_out_in.T.astype(jnp.float32), jnp.zeros((1, fan_out), jnp.float32)


def make_params(num_inputs, num_outputs, hidden=_HID, seed=0):
    keys = jax.random.split(jax.random.PRNGKey(seed), 4)
    g = math.sqrt(2.0)
    w1, b1 = orthogonal_linear(keys[0], num_inputs, hidden, g)
    w2, b2 = orthogonal_linear(keys[1], hidden, hidden, g)
    w3, b3 = orthogonal_linear(keys[2], hidden, hidden, g)
    wm, bm = orthogonal_linear(keys[3], hidden, num_outputs, 1.0)  # DiagGaussian fc_mean
    logstd = jnp.zeros((1, num_outputs), jnp.float32)              # AddBias zeros
    return (w1, b1, w2, b2, w3, b3, wm, bm, logstd)


# ----------------------------------------------------------------------------
# Pure-JAX reference (matmul_dtype lets us mirror the kernel's bf16 operands)
# ----------------------------------------------------------------------------
def reference(x, y, params, matmul_dtype=jnp.float32):
    (w1, b1, w2, b2, w3, b3, wm, bm, logstd) = params
    dot = lambda a, b: jnp.dot(a.astype(matmul_dtype), b.astype(matmul_dtype),
                               preferred_element_type=jnp.float32)
    h = jnp.maximum(dot(x, w1) + b1, 0.0)
    h = jnp.maximum(dot(h, w2) + b2, 0.0)
    h = jnp.maximum(dot(h, w3) + b3, 0.0)
    mean = dot(h, wm) + bm
    std = jnp.exp(logstd)
    lp = (-((y - mean) ** 2) / (2.0 * std ** 2) - logstd - _LOG_SQRT_2PI)
    return mean, jnp.sum(lp, axis=-1, keepdims=True)


if __name__ == "__main__":
    # obs_shape = (16,), action_space = Box(shape=(16,))
    #  -> num_inputs = 16 + 16 = 32, num_outputs = 16, hidden = 128
    obs_dim, act_dim, batch = 16, 16, 8
    num_inputs, num_outputs = obs_dim + act_dim, obs_dim

    params = make_params(num_inputs, num_outputs, hidden=_HID, seed=0)
    w_packed, consts, meta = pack_params(params)          # packed ONCE, reused per call

    key = jax.random.PRNGKey(0)
    kx, ky = jax.random.split(key)
    x = jax.random.normal(kx, (batch, num_inputs), dtype=jnp.float32)   # [obs ; action]
    y = jax.random.normal(ky, (batch, num_outputs), dtype=jnp.float32)  # next-obs target

    mean, log_prob = run_model(x, y, w_packed, consts, **meta)
    jax.block_until_ready((mean, log_prob))

    # Tight check against a reference that mirrors the kernel's bf16 matmul operands.
    ref_mean_bf, ref_lp_bf = reference(x, y, params, matmul_dtype=jnp.bfloat16)
    np.testing.assert_allclose(np.asarray(mean), np.asarray(ref_mean_bf),
                               rtol=2e-3, atol=2e-3)
    np.testing.assert_allclose(np.asarray(log_prob), np.asarray(ref_lp_bf),
                               rtol=2e-3, atol=2e-3)

    # Loose sanity check against the full-fp32 reference (bf16 quantization noise).
    ref_mean, ref_lp = reference(x, y, params, matmul_dtype=jnp.float32)
    np.testing.assert_allclose(np.asarray(mean), np.asarray(ref_mean),
                               rtol=1e-1, atol=2e-1)
    np.testing.assert_allclose(np.asarray(log_prob), np.asarray(ref_lp),
                               rtol=1e-1, atol=2e-1)

    print("KERNEL_OK")
</pallas_src>

<mosaic_0001>
module attributes {stable_mosaic.version = 11 : i64} {
  func.func @model_kernel(%arg0: i32, %arg1: memref<16x32xbf16, #tpu.memory_space<vmem>>, %arg2: memref<16x16xf32, #tpu.memory_space<vmem>>, %arg3: memref<416x128xbf16, #tpu.memory_space<vmem>>, %arg4: memref<8x128xf32, #tpu.memory_space<vmem>>, %arg5: memref<16x32xf32, #tpu.memory_space<vmem>>) attributes {dimension_semantics = [#tpu.dimension_semantics<parallel>], iteration_bounds = array<i64: 1>, scalar_prefetch = 0 : i64, scratch_operands = 0 : i64, tpu.core_type = #tpu.core_type<tc>, window_params = [{transform_indices = @transform_0, window_bounds = array<i64: 16, 32>}, {transform_indices = @transform_1, window_bounds = array<i64: 16, 16>}, {pipeline_mode = #tpu.pipeline_mode<synchronous>, transform_indices = @transform_2, window_bounds = array<i64: 416, 128>}, {pipeline_mode = #tpu.pipeline_mode<synchronous>, transform_indices = @transform_3, window_bounds = array<i64: 8, 128>}, {transform_indices = @transform_4, window_bounds = array<i64: 16, 32>}]} {
    %c0 = arith.constant 0 : index
    %c0_0 = arith.constant 0 : index
    %0 = vector.load %arg3[%c0, %c0_0] : memref<416x128xbf16, #tpu.memory_space<vmem>>, vector<32x128xbf16>
    %c32 = arith.constant 32 : index
    %c0_1 = arith.constant 0 : index
    %1 = vector.load %arg3[%c32, %c0_1] : memref<416x128xbf16, #tpu.memory_space<vmem>>, vector<128x128xbf16>
    %c160 = arith.constant 160 : index
    %c0_2 = arith.constant 0 : index
    %2 = vector.load %arg3[%c160, %c0_2] : memref<416x128xbf16, #tpu.memory_space<vmem>>, vector<128x128xbf16>
    %c288 = arith.constant 288 : index
    %c0_3 = arith.constant 0 : index
    %3 = vector.load %arg3[%c288, %c0_3] : memref<416x128xbf16, #tpu.memory_space<vmem>>, vector<128x128xbf16>
    %c0_4 = arith.constant 0 : index
    %c0_5 = arith.constant 0 : index
    %4 = vector.load %arg4[%c0_4, %c0_5] : memref<8x128xf32, #tpu.memory_space<vmem>>, vector<1x128xf32>
    %c1 = arith.constant 1 : index
    %c0_6 = arith.constant 0 : index
    %5 = vector.load %arg4[%c1, %c0_6] : memref<8x128xf32, #tpu.memory_space<vmem>>, vector<1x128xf32>
    %c2 = arith.constant 2 : index
    %c0_7 = arith.constant 0 : index
    %6 = vector.load %arg4[%c2, %c0_7] : memref<8x128xf32, #tpu.memory_space<vmem>>, vector<1x128xf32>
    %c3 = arith.constant 3 : index
    %c0_8 = arith.constant 0 : index
    %7 = vector.load %arg4[%c3, %c0_8] : memref<8x128xf32, #tpu.memory_space<vmem>>, vector<1x128xf32>
    %c4 = arith.constant 4 : index
    %c0_9 = arith.constant 0 : index
    %8 = vector.load %arg4[%c4, %c0_9] : memref<8x128xf32, #tpu.memory_space<vmem>>, vector<1x16xf32>
    %c5 = arith.constant 5 : index
    %c0_10 = arith.constant 0 : index
    %9 = vector.load %arg4[%c5, %c0_10] : memref<8x128xf32, #tpu.memory_space<vmem>>, vector<1x16xf32>
    %c0_11 = arith.constant 0 : index
    %c0_12 = arith.constant 0 : index
    %10 = vector.load %arg1[%c0_11, %c0_12] : memref<16x32xbf16, #tpu.memory_space<vmem>>, vector<16x32xbf16>
    %cst = arith.constant dense<0.000000e+00> : vector<16x128xf32>
    %11 = tpu.matmul %10, %0, %cst {dimension_numbers = #tpu.dot_dimension_numbers<[1], [0], [0], [1], [0, 0, 1, 1], [], []>} : vector<16x32xbf16>, vector<32x128xbf16>, vector<16x128xf32> -> vector<16x128xf32>
    %12 = vector.broadcast %4 : vector<1x128xf32> to vector<16x128xf32>
    %13 = arith.addf %11, %12 : vector<16x128xf32>
    %cst_13 = arith.constant 0.000000e+00 : f32
    %14 = vector.broadcast %cst_13 : f32 to vector<16x128xf32>
    %15 = arith.maximumf %13, %14 : vector<16x128xf32>
    %16 = arith.truncf %15 : vector<16x128xf32> to vector<16x128xbf16>
    %cst_14 = arith.constant dense<0.000000e+00> : vector<16x128xf32>
    %17 = tpu.matmul %16, %1, %cst_14 {dimension_numbers = #tpu.dot_dimension_numbers<[1], [0], [0], [1], [0, 0, 1, 1], [], []>} : vector<16x128xbf16>, vector<128x128xbf16>, vector<16x128xf32> -> vector<16x128xf32>
    %18 = vector.broadcast %5 : vector<1x128xf32> to vector<16x128xf32>
    %19 = arith.addf %17, %18 : vector<16x128xf32>
    %cst_15 = arith.constant 0.000000e+00 : f32
    %20 = vector.broadcast %cst_15 : f32 to vector<16x128xf32>
    %21 = arith.maximumf %19, %20 : vector<16x128xf32>
    %22 = arith.truncf %21 : vector<16x128xf32> to vector<16x128xbf16>
    %cst_16 = arith.constant dense<0.000000e+00> : vector<16x128xf32>
    %23 = tpu.matmul %22, %2, %cst_16 {dimension_numbers = #tpu.dot_dimension_numbers<[1], [0], [0], [1], [0, 0, 1, 1], [], []>} : vector<16x128xbf16>, vector<128x128xbf16>, vector<16x128xf32> -> vector<16x128xf32>
    %24 = vector.broadcast %6 : vector<1x128xf32> to vector<16x128xf32>
    %25 = arith.addf %23, %24 : vector<16x128xf32>
    %cst_17 = arith.constant 0.000000e+00 : f32
    %26 = vector.broadcast %cst_17 : f32 to vector<16x128xf32>
    %27 = arith.maximumf %25, %26 : vector<16x128xf32>
    %28 = arith.truncf %27 : vector<16x128xf32> to vector<16x128xbf16>
    %cst_18 = arith.constant dense<0.000000e+00> : vector<16x128xf32>
    %29 = tpu.matmul %28, %3, %cst_18 {dimension_numbers = #tpu.dot_dimension_numbers<[1], [0], [0], [1], [0, 0, 1, 1], [], []>} : vector<16x128xbf16>, vector<128x128xbf16>, vector<16x128xf32> -> vector<16x128xf32>
    %30 = vector.broadcast %7 : vector<1x128xf32> to vector<16x128xf32>
    %31 = arith.addf %29, %30 : vector<16x128xf32>
    %c0_19 = arith.constant 0 : index
    %c0_20 = arith.constant 0 : index
    %32 = vector.load %arg2[%c0_19, %c0_20] : memref<16x16xf32, #tpu.memory_space<vmem>>, vector<16x16xf32>
    %33 = vector.extract_strided_slice %31 {offsets = [0, 0], sizes = [16, 16], strides = [1, 1]} : vector<16x128xf32> to vector<16x16xf32>
    %34 = arith.subf %32, %33 : vector<16x16xf32>
    %35 = arith.mulf %34, %34 : vector<16x16xf32>
    %36 = vector.broadcast %8 : vector<1x16xf32> to vector<16x16xf32>
    %37 = arith.mulf %35, %36 : vector<16x16xf32>
    %38 = vector.broadcast %9 : vector<1x16xf32> to vector<16x16xf32>
    %39 = arith.addf %37, %38 : vector<16x16xf32>
    %cst_21 = arith.constant dense<0.000000e+00> : vector<16xf32>
    %40 = vector.multi_reduction <add>, %39, %cst_21 [1] : vector<16x16xf32> to vector<16xf32>
    %41 = vector.shape_cast %40 : vector<16xf32> to vector<16x1xf32>
    %42 = vector.extract_strided_slice %31 {offsets = [0, 0], sizes = [16, 32], strides = [1, 1]} : vector<16x128xf32> to vector<16x32xf32>
    %43 = tpu.iota {dimensions = array<i32: 1>} : vector<16x32xi32>
    %c16_i32 = arith.constant 16 : i32
    %44 = vector.broadcast %c16_i32 : i32 to vector<16x32xi32>
    %45 = arith.cmpi eq, %43, %44 : vector<16x32xi32>
    %46 = vector.shape_cast %41 : vector<16x1xf32> to vector<16x1xf32>
    %47 = vector.broadcast %46 : vector<16x1xf32> to vector<16x32xf32>
    %48 = arith.select %45, %47, %42 : vector<16x32xi1>, vector<16x32xf32>
    %c0_22 = arith.constant 0 : index
    %c0_23 = arith.constant 0 : index
    %49 = vector.load %arg5[%c0_22, %c0_23] : memref<16x32xf32, #tpu.memory_space<vmem>>, vector<16x32xf32>
    tpu.vector_store %arg5[%c0_22, %c0_23], %48 {strides = array<i32>} : memref<16x32xf32, #tpu.memory_space<vmem>>, vector<16x32xf32>,
    return
  }
  func.func @transform_0(%arg0: i32) -> (i32, i32) {
    %c0_i32 = arith.constant 0 : i32
    %c0_i32_0 = arith.constant 0 : i32
    return %arg0, %c0_i32 : i32, i32
  }
  func.func @transform_1(%arg0: i32) -> (i32, i32) {
    %c0_i32 = arith.constant 0 : i32
    %c0_i32_0 = arith.constant 0 : i32
    return %arg0, %c0_i32 : i32, i32
  }
  func.func @transform_2(%arg0: i32) -> (i32, i32) {
    %c0_i32 = arith.constant 0 : i32
    %c0_i32_0 = arith.constant 0 : i32
    %c0_i32_1 = arith.constant 0 : i32
    return %c0_i32, %c0_i32_0 : i32, i32
  }
  func.func @transform_3(%arg0: i32) -> (i32, i32) {
    %c0_i32 = arith.constant 0 : i32
    %c0_i32_0 = arith.constant 0 : i32
    %c0_i32_1 = arith.constant 0 : i32
    return %c0_i32, %c0_i32_0 : i32, i32
  }
  func.func @transform_4(%arg0: i32) -> (i32, i32) {
    %c0_i32 = arith.constant 0 : i32
    %c0_i32_0 = arith.constant 0 : i32
    return %arg0, %c0_i32 : i32, i32
  }
}

</mosaic_0001>

<llo_original>
// kernel: run_model.1
$region0: #{run_model.1}
  #allocation0 [shape = 'u32[]', space=smem, size = 0x4, offset = 0x4, fixed_abs, tag = 'smem constant byte address 0x4 - core index']
  #allocation1 [shape = 'u32[144,128]{1,0:T(1,128)}', space=vmem, size = 0x12000, scoped, tag = 'internal scratch']
  %s0 = inlined_call_operand.vmem [shape: bf16[16,32], index: 0, kind: input, shape index: {}]
  %s1 = inlined_call_operand.vmem [shape: f32[16,16], index: 1, kind: input, shape index: {}]
  %s2 = inlined_call_operand.hbm [shape: bf16[416,128], index: 2, kind: input, shape index: {}]
  %s3 = inlined_call_operand.vmem [shape: f32[8,128], index: 3, kind: input, shape index: {}]
  %s4 = inlined_call_operand.vmem [shape: f32[16,32], index: 4, kind: output, shape index: {}]
  %s5 = sld [smem:[#allocation0]]
  $region30: #{run_model.1} parent=0
    _
  %s7 = ssub.s32 1, %s5
  %s8 = scalar_select 0, %s7, %s5
  $region1: #{run_model.1} parent=0
    #allocation2 [shape = 'u8[106496]{0}', space=vmem, size = 0x1a000, scoped, tag = 'input window, operand 2, single buffered']
    #allocation3 [shape = 's32[1]{0}', space=sflag, size = 0x4, scoped, tag = 'scoped memory for run_model.1']
    %9 = vsyncpa [#allocation3], 0
    // Predicated region
    $region2: #{run_model.1} parent=1 // pred_check
      _
    $region3: #{run_model.1} parent=1 // pred_check_branch
      %11 = sbr.rel (0) target = $region5
    $region4: #{run_model.1} parent=1 // pred_region
      _
    $region5: #{run_model.1} parent=1 // pred_fallthru
      _
    // Predicated region
    $region6: #{run_model.1} parent=1 // pred_check
      _
    $region7: #{run_model.1} parent=1 // pred_check_branch
      %13 = sbr.rel (0) target = $region9
    $region8: #{run_model.1} parent=1 // pred_region
      _
    $region9: #{run_model.1} parent=1 // pred_fallthru
      _
    // Predicated region
    $region10: #{run_model.1} parent=1 // pred_check
      _
    $region11: #{run_model.1} parent=1 // pred_check_branch
      %15 = sbr.rel (0) target = $region13
    $region12: #{run_model.1} parent=1 // pred_region
      %s17 = ssub.s32 3328, 3328
      %18 = vsyncadd [#allocation3], %s17
      %s19 = sshll.u32 [#allocation2], 4
      %s20 = int_to_ptr.vmem [resolvable:$true] %s19
      %25 = dma.hbm_to_vmem [thread:$0]  %s2, 3328, %s20, [#allocation3], 64, 64, 4
    $region13: #{run_model.1} parent=1 // pred_fallthru
      _
    // Predicated region
    $region14: #{run_model.1} parent=1 // pred_check
      _
    $region15: #{run_model.1} parent=1 // pred_check_branch
      %27 = sbr.rel (0) target = $region17
    $region16: #{run_model.1} parent=1 // pred_region
      _
    $region17: #{run_model.1} parent=1 // pred_fallthru
      _
    // Predicated region
    $region18: #{run_model.1} parent=1 // pred_check
      _
    $region19: #{run_model.1} parent=1 // pred_check_branch
      %29 = sbr.rel (0) target = $region21
    $region20: #{run_model.1} parent=1 // pred_region
      %30 = dma.done [#allocation3], 3328
    $region21: #{run_model.1} parent=1 // pred_fallthru
      _
    %v32 = vld [vmem:[#allocation2] sm:$0xf]
    %v33 = vld [vmem:[#allocation2 + $0x4] sm:$0xf]
    %v34 = vld [vmem:[#allocation2 + $0x8] sm:$0xf]
    %v35 = vld [vmem:[#allocation2 + $0xc] sm:$0xf]
    %v36 = vld [vmem:[#allocation2 + $0x10] sm:$0xf]
    %v37 = vld [vmem:[#allocation2 + $0x14] sm:$0xf]
    %v38 = vld [vmem:[#allocation2 + $0x18] sm:$0xf]
    %v39 = vld [vmem:[#allocation2 + $0x1c] sm:$0xf]
    %v40 = vld [vmem:[#allocation2 + $0x20] sm:$0xf]
    %v41 = vld [vmem:[#allocation2 + $0x24] sm:$0xf]
    %v42 = vld [vmem:[#allocation2 + $0x28] sm:$0xf]
    %v43 = vld [vmem:[#allocation2 + $0x2c] sm:$0xf]
    %v44 = vld [vmem:[#allocation2 + $0x30] sm:$0xf]
    %v45 = vld [vmem:[#allocation2 + $0x34] sm:$0xf]
    %v46 = vld [vmem:[#allocation2 + $0x38] sm:$0xf]
    %v47 = vld [vmem:[#allocation2 + $0x3c] sm:$0xf]
    %v48 = vld [vmem:[#allocation2 + $0x40] sm:$0xf]
    %v49 = vld [vmem:[#allocation2 + $0x44] sm:$0xf]
    %v50 = vld [vmem:[#allocation2 + $0x48] sm:$0xf]
    %v51 = vld [vmem:[#allocation2 + $0x4c] sm:$0xf]
    %v52 = vld [vmem:[#allocation2 + $0x50] sm:$0xf]
    %v53 = vld [vmem:[#allocation2 + $0x54] sm:$0xf]
    %v54 = vld [vmem:[#allocation2 + $0x58] sm:$0xf]
    %v55 = vld [vmem:[#allocation2 + $0x5c] sm:$0xf]
    %v56 = vld [vmem:[#allocation2 + $0x60] sm:$0xf]
    %v57 = vld [vmem:[#allocation2 + $0x64] sm:$0xf]
    %v58 = vld [vmem:[#allocation2 + $0x68] sm:$0xf]
    %v59 = vld [vmem:[#allocation2 + $0x6c] sm:$0xf]
    %v60 = vld [vmem:[#allocation2 + $0x70] sm:$0xf]
    %v61 = vld [vmem:[#allocation2 + $0x74] sm:$0xf]
    %v62 = vld [vmem:[#allocation2 + $0x78] sm:$0xf]
    %v63 = vld [vmem:[#allocation2 + $0x7c] sm:$0xf]
    %v64 = vld [vmem:[#allocation2 + $0x80] sm:$0xf]
    %v65 = vld [vmem:[#allocation2 + $0x84] sm:$0xf]
    %v66 = vld [vmem:[#allocation2 + $0x88] sm:$0xf]
    %v67 = vld [vmem:[#allocation2 + $0x8c] sm:$0xf]
    %v68 = vld [vmem:[#allocation2 + $0x90] sm:$0xf]
    %v69 = vld [vmem:[#allocation2 + $0x94] sm:$0xf]
    %v70 = vld [vmem:[#allocation2 + $0x98] sm:$0xf]
    %v71 = vld [vmem:[#allocation2 + $0x9c] sm:$0xf]
    %v72 = vld [vmem:[#allocation2 + $0xa0] sm:$0xf]
    %v73 = vld [vmem:[#allocation2 + $0xa4] sm:$0xf]
    %v74 = vld [vmem:[#allocation2 + $0xa8] sm:$0xf]
    %v75 = vld [vmem:[#allocation2 + $0xac] sm:$0xf]
    %v76 = vld [vmem:[#allocation2 + $0xb0] sm:$0xf]
    %v77 = vld [vmem:[#allocation2 + $0xb4] sm:$0xf]
    %v78 = vld [vmem:[#allocation2 + $0xb8] sm:$0xf]
    %v79 = vld [vmem:[#allocation2 + $0xbc] sm:$0xf]
    %v80 = vld [vmem:[#allocation2 + $0xc0] sm:$0xf]
    %v81 = vld [vmem:[#allocation2 + $0xc4] sm:$0xf]
    %v82 = vld [vmem:[#allocation2 + $0xc8] sm:$0xf]
    %v83 = vld [vmem:[#allocation2 + $0xcc] sm:$0xf]
    %v84 = vld [vmem:[%s3] sm:$0x1]
    %v85 = vld [vmem:[%s3 + $0x1] sm:$0x1]
    %v86 = vld [vmem:[%s3 + $0x2] sm:$0x1]
    %v87 = vld [vmem:[%s3 + $0x3] sm:$0x1]
    %v88 = vld [vmem:[%s3 + $0x4] sm:$0x1]
    %v89 = vld [vmem:[%s3 + $0x5] sm:$0x1]
    %v90 = vld [vmem:[%s0] sm:$0xf]
    %v91 = vld [vmem:[%s0 + $0x4] sm:$0xf]
    %v92 = vlaneseq
    %v93 = vshrl.u32 %v92, 7
    %v94 = vsub.s32 0, %v93
    %v95 = vrot.slane %v84, %v94
    %v98 = vunpack.c.l.b16 %v90
    %v99 = vunpack.c.l.b16 %v91
    %v100 = vpack.c.b16 %v99, %v98
    %v105 = vunpack.c.l.b16 %v32
    %v106 = vunpack.c.l.b16 %v33
    %v107 = vunpack.c.l.b16 %v34
    %v108 = vunpack.c.l.b16 %v35
    %v109 = vpack.c.b16 %v106, %v105
    %v110 = vpack.c.b16 %v108, %v107
    %vm113 = vcmask 261120
    %v115 = vsel %vm113, %v100, 0
    %117 = vmatprep.subr.bf16.mxu0 0
    %118 = vmatpush1.bf16.msra.mxu0 %v109
    %119 = vmatprep.subr.bf16.mxu0 0
    %120 = vmatpush1.bf16.msra.mxu0 %v110
    %121 = vmatprep.subr.bf16.mxu0 0
    %122 = vmatpush1.bf16.msra.mxu0 0
    %123 = vmatprep.subr.bf16.mxu0 0
    %124 = vmatpush1.bf16.msra.mxu0 0
    %125 = vmatprep.subr.bf16.mxu0 0
    %126 = vmatpush1.bf16.msra.mxu0 0
    %127 = vmatprep.subr.bf16.mxu0 0
    %128 = vmatpush1.bf16.msra.mxu0 0
    %129 = vmatprep.subr.bf16.mxu0 0
    %130 = vmatpush1.bf16.msra.mxu0 0
    %131 = vmatprep.subr.bf16.mxu0 0
    %132 = vmatpush1.bf16.msra.mxu0 0
    %133 = vmatprep.subr.bf16.mxu0 0
    %134 = vmatpush1.bf16.msra.mxu0 0
    %135 = vmatprep.subr.bf16.mxu0 0
    %136 = vmatpush1.bf16.msra.mxu0 0
    %137 = vmatprep.subr.bf16.mxu0 0
    %138 = vmatpush1.bf16.msra.mxu0 0
    %139 = vmatprep.subr.bf16.mxu0 0
    %140 = vmatpush1.bf16.msra.mxu0 0
    %141 = vmatprep.subr.bf16.mxu0 0
    %142 = vmatpush1.bf16.msra.mxu0 0
    %143 = vmatprep.subr.bf16.mxu0 0
    %144 = vmatpush1.bf16.msra.mxu0 0
    %145 = vmatprep.subr.bf16.mxu0 0
    %146 = vmatpush1.bf16.msra.mxu0 0
    %147 = vmatprep.subr.bf16.mxu0 0
    %148 = vmatpush1.bf16.msra.mxu0 0
    %149 = vmatprep.mubr.bf16.mxu0 0
    %150 = vmatmul.mubr.bf16.gmra.mrb[0].mxu0 %v115
    %v151 = vpop.f32.mrb[0].mxu0
    %v152 = vadd.f32 %v95, %v151
    %v153 = vpop.f32.mrb[0].mxu0
    %v154 = vpop.f32.mrb[0].mxu0
    %v155 = vadd.f32 %v95, %v154
    %v156 = vpop.f32.mrb[0].mxu0
    %157 = vdwg.mxu0
    %v158 = vmax.f32 %v152, 0.0
    %v159 = vmax.f32 %v155, 0.0
    %v160 = vpack.c.bf16 %v159, %v158
    %v161 = vlaneseq
    %v162 = vshrl.u32 %v161, 7
    %v163 = vsub.s32 0, %v162
    %v164 = vrot.slane %v85, %v163
    %v181 = vunpack.c.l.b16 %v36
    %v182 = vunpack.c.l.b16 %v37
    %v183 = vunpack.c.l.b16 %v38
    %v184 = vunpack.c.l.b16 %v39
    %v185 = vunpack.c.l.b16 %v40
    %v186 = vunpack.c.l.b16 %v41
    %v187 = vunpack.c.l.b16 %v42
    %v188 = vunpack.c.l.b16 %v43
    %v189 = vunpack.c.l.b16 %v44
    %v190 = vunpack.c.l.b16 %v45
    %v191 = vunpack.c.l.b16 %v46
    %v192 = vunpack.c.l.b16 %v47
    %v193 = vunpack.c.l.b16 %v48
    %v194 = vunpack.c.l.b16 %v49
    %v195 = vunpack.c.l.b16 %v50
    %v196 = vunpack.c.l.b16 %v51
    %v197 = vpack.c.b16 %v182, %v181
    %v198 = vpack.c.b16 %v184, %v183
    %v199 = vpack.c.b16 %v186, %v185
    %v200 = vpack.c.b16 %v188, %v187
    %v201 = vpack.c.b16 %v190, %v189
    %v202 = vpack.c.b16 %v192, %v191
    %v203 = vpack.c.b16 %v194, %v193
    %v204 = vpack.c.b16 %v196, %v195
    %213 = vmatprep.subr.bf16.mxu0 0
    %214 = vmatpush1.bf16.msra.mxu0 %v197
    %215 = vmatprep.subr.bf16.mxu0 0
    %216 = vmatpush1.bf16.msra.mxu0 %v198
    %217 = vmatprep.subr.bf16.mxu0 0
    %218 = vmatpush1.bf16.msra.mxu0 %v199
    %219 = vmatprep.subr.bf16.mxu0 0
    %220 = vmatpush1.bf16.msra.mxu0 %v200
    %221 = vmatprep.subr.bf16.mxu0 0
    %222 = vmatpush1.bf16.msra.mxu0 %v201
    %223 = vmatprep.subr.bf16.mxu0 0
    %224 = vmatpush1.bf16.msra.mxu0 %v202
    %225 = vmatprep.subr.bf16.mxu0 0
    %226 = vmatpush1.bf16.msra.mxu0 %v203
    %227 = vmatprep.subr.bf16.mxu0 0
    %228 = vmatpush1.bf16.msra.mxu0 %v204
    %229 = vmatprep.subr.bf16.mxu0 0
    %230 = vmatpush1.bf16.msra.mxu0 0
    %231 = vmatprep.subr.bf16.mxu0 0
    %232 = vmatpush1.bf16.msra.mxu0 0
    %233 = vmatprep.subr.bf16.mxu0 0
    %234 = vmatpush1.bf16.msra.mxu0 0
    %235 = vmatprep.subr.bf16.mxu0 0
    %236 = vmatpush1.bf16.msra.mxu0 0
    %237 = vmatprep.subr.bf16.mxu0 0
    %238 = vmatpush1.bf16.msra.mxu0 0
    %239 = vmatprep.subr.bf16.mxu0 0
    %240 = vmatpush1.bf16.msra.mxu0 0
    %241 = vmatprep.subr.bf16.mxu0 0
    %242 = vmatpush1.bf16.msra.mxu0 0
    %243 = vmatprep.subr.bf16.mxu0 0
    %244 = vmatpush1.bf16.msra.mxu0 0
    %245 = vmatprep.mubr.bf16.mxu0 0
    %246 = vmatmul.mubr.bf16.gmra.mrb[0].mxu0 %v160
    %v247 = vpop.f32.mrb[0].mxu0
    %v248 = vadd.f32 %v164, %v247
    %v249 = vpop.f32.mrb[0].mxu0
    %v250 = vpop.f32.mrb[0].mxu0
    %v251 = vadd.f32 %v164, %v250
    %v252 = vpop.f32.mrb[0].mxu0
    %253 = vdwg.mxu0
    %v254 = vmax.f32 %v248, 0.0
    %v255 = vmax.f32 %v251, 0.0
    %v256 = vpack.c.bf16 %v255, %v254
    %v257 = vlaneseq
    %v258 = vshrl.u32 %v257, 7
    %v259 = vsub.s32 0, %v258
    %v260 = vrot.slane %v86, %v259
    %v277 = vunpack.c.l.b16 %v52
    %v278 = vunpack.c.l.b16 %v53
    %v279 = vunpack.c.l.b16 %v54
    %v280 = vunpack.c.l.b16 %v55
    %v281 = vunpack.c.l.b16 %v56
    %v282 = vunpack.c.l.b16 %v57
    %v283 = vunpack.c.l.b16 %v58
    %v284 = vunpack.c.l.b16 %v59
    %v285 = vunpack.c.l.b16 %v60
    %v286 = vunpack.c.l.b16 %v61
    %v287 = vunpack.c.l.b16 %v62
    %v288 = vunpack.c.l.b16 %v63
    %v289 = vunpack.c.l.b16 %v64
    %v290 = vunpack.c.l.b16 %v65
    %v291 = vunpack.c.l.b16 %v66
    %v292 = vunpack.c.l.b16 %v67
    %v293 = vpack.c.b16 %v278, %v277
    %v294 = vpack.c.b16 %v280, %v279
    %v295 = vpack.c.b16 %v282, %v281
    %v296 = vpack.c.b16 %v284, %v283
    %v297 = vpack.c.b16 %v286, %v285
    %v298 = vpack.c.b16 %v288, %v287
    %v299 = vpack.c.b16 %v290, %v289
    %v300 = vpack.c.b16 %v292, %v291
    %309 = vmatprep.subr.bf16.mxu0 0
    %310 = vmatpush1.bf16.msra.mxu0 %v293
    %311 = vmatprep.subr.bf16.mxu0 0
    %312 = vmatpush1.bf16.msra.mxu0 %v294
    %313 = vmatprep.subr.bf16.mxu0 0
    %314 = vmatpush1.bf16.msra.mxu0 %v295
    %315 = vmatprep.subr.bf16.mxu0 0
    %316 = vmatpush1.bf16.msra.mxu0 %v296
    %317 = vmatprep.subr.bf16.mxu0 0
    %318 = vmatpush1.bf16.msra.mxu0 %v297
    %319 = vmatprep.subr.bf16.mxu0 0
    %320 = vmatpush1.bf16.msra.mxu0 %v298
    %321 = vmatprep.subr.bf16.mxu0 0
    %322 = vmatpush1.bf16.msra.mxu0 %v299
    %323 = vmatprep.subr.bf16.mxu0 0
    %324 = vmatpush1.bf16.msra.mxu0 %v300
    %325 = vmatprep.subr.bf16.mxu0 0
    %326 = vmatpush1.bf16.msra.mxu0 0
    %327 = vmatprep.subr.bf16.mxu0 0
    %328 = vmatpush1.bf16.msra.mxu0 0
    %329 = vmatprep.subr.bf16.mxu0 0
    %330 = vmatpush1.bf16.msra.mxu0 0
    %331 = vmatprep.subr.bf16.mxu0 0
    %332 = vmatpush1.bf16.msra.mxu0 0
    %333 = vmatprep.subr.bf16.mxu0 0
    %334 = vmatpush1.bf16.msra.mxu0 0
    %335 = vmatprep.subr.bf16.mxu0 0
    %336 = vmatpush1.bf16.msra.mxu0 0
    %337 = vmatprep.subr.bf16.mxu0 0
    %338 = vmatpush1.bf16.msra.mxu0 0
    %339 = vmatprep.subr.bf16.mxu0 0
    %340 = vmatpush1.bf16.msra.mxu0 0
    %341 = vmatprep.mubr.bf16.mxu0 0
    %342 = vmatmul.mubr.bf16.gmra.mrb[0].mxu0 %v256
    %v343 = vpop.f32.mrb[0].mxu0
    %v344 = vadd.f32 %v260, %v343
    %v345 = vpop.f32.mrb[0].mxu0
    %v346 = vpop.f32.mrb[0].mxu0
    %v347 = vadd.f32 %v260, %v346
    %v348 = vpop.f32.mrb[0].mxu0
    %349 = vdwg.mxu0
    %v350 = vmax.f32 %v344, 0.0
    %v351 = vmax.f32 %v347, 0.0
    %v352 = vpack.c.bf16 %v351, %v350
    %v353 = vlaneseq
    %v354 = vshrl.u32 %v353, 7
    %v355 = vsub.s32 0, %v354
    %v356 = vrot.slane %v87, %v355
    %v373 = vunpack.c.l.b16 %v68
    %v374 = vunpack.c.l.b16 %v69
    %v375 = vunpack.c.l.b16 %v70
    %v376 = vunpack.c.l.b16 %v71
    %v377 = vunpack.c.l.b16 %v72
    %v378 = vunpack.c.l.b16 %v73
    %v379 = vunpack.c.l.b16 %v74
    %v380 = vunpack.c.l.b16 %v75
    %v381 = vunpack.c.l.b16 %v76
    %v382 = vunpack.c.l.b16 %v77
    %v383 = vunpack.c.l.b16 %v78
    %v384 = vunpack.c.l.b16 %v79
    %v385 = vunpack.c.l.b16 %v80
    %v386 = vunpack.c.l.b16 %v81
    %v387 = vunpack.c.l.b16 %v82
    %v388 = vunpack.c.l.b16 %v83
    %v389 = vpack.c.b16 %v374, %v373
    %v390 = vpack.c.b16 %v376, %v375
    %v391 = vpack.c.b16 %v378, %v377
    %v392 = vpack.c.b16 %v380, %v379
    %v393 = vpack.c.b16 %v382, %v381
    %v394 = vpack.c.b16 %v384, %v383
    %v395 = vpack.c.b16 %v386, %v385
    %v396 = vpack.c.b16 %v388, %v387
    %405 = vmatprep.subr.bf16.mxu0 0
    %406 = vmatpush1.bf16.msra.mxu0 %v389
    %407 = vmatprep.subr.bf16.mxu0 0
    %408 = vmatpush1.bf16.msra.mxu0 %v390
    %409 = vmatprep.subr.bf16.mxu0 0
    %410 = vmatpush1.bf16.msra.mxu0 %v391
    %411 = vmatprep.subr.bf16.mxu0 0
    %412 = vmatpush1.bf16.msra.mxu0 %v392
    %413 = vmatprep.subr.bf16.mxu0 0
    %414 = vmatpush1.bf16.msra.mxu0 %v393
    %415 = vmatprep.subr.bf16.mxu0 0
    %416 = vmatpush1.bf16.msra.mxu0 %v394
    %417 = vmatprep.subr.bf16.mxu0 0
    %418 = vmatpush1.bf16.msra.mxu0 %v395
    %419 = vmatprep.subr.bf16.mxu0 0
    %420 = vmatpush1.bf16.msra.mxu0 %v396
    %421 = vmatprep.subr.bf16.mxu0 0
    %422 = vmatpush1.bf16.msra.mxu0 0
    %423 = vmatprep.subr.bf16.mxu0 0
    %424 = vmatpush1.bf16.msra.mxu0 0
    %425 = vmatprep.subr.bf16.mxu0 0
    %426 = vmatpush1.bf16.msra.mxu0 0
    %427 = vmatprep.subr.bf16.mxu0 0
    %428 = vmatpush1.bf16.msra.mxu0 0
    %429 = vmatprep.subr.bf16.mxu0 0
    %430 = vmatpush1.bf16.msra.mxu0 0
    %431 = vmatprep.subr.bf16.mxu0 0
    %432 = vmatpush1.bf16.msra.mxu0 0
    %433 = vmatprep.subr.bf16.mxu0 0
    %434 = vmatpush1.bf16.msra.mxu0 0
    %435 = vmatprep.subr.bf16.mxu0 0
    %436 = vmatpush1.bf16.msra.mxu0 0
    %437 = vmatprep.mubr.bf16.mxu0 0
    %438 = vmatmul.mubr.bf16.gmra.mrb[0].mxu0 %v352
    %v439 = vpop.f32.mrb[0].mxu0
    %v440 = vadd.f32 %v356, %v439
    %v441 = vpop.f32.mrb[0].mxu0
    %v442 = vpop.f32.mrb[0].mxu0
    %v443 = vadd.f32 %v356, %v442
    %v444 = vpop.f32.mrb[0].mxu0
    %445 = vdwg.mxu0
    %v446 = vld [vmem:[%s1] sm:$0xff]
    %v447 = vld [vmem:[%s1 + $0x8] sm:$0xff]
    %v448 = vsub.f32 %v446, %v440
    %v449 = vsub.f32 %v447, %v443
    %v450 = vmul.f32 %v448, %v448
    %v451 = vmul.f32 %v449, %v449
    %v452 = vlaneseq
    %v453 = vshrl.u32 %v452, 7
    %v454 = vsub.s32 0, %v453
    %v455 = vrot.slane %v88, %v454
    %v456 = vmul.f32 %v450, %v455
    %v457 = vmul.f32 %v451, %v455
    %v458 = vlaneseq
    %v459 = vshrl.u32 %v458, 7
    %v460 = vsub.s32 0, %v459
    %v461 = vrot.slane %v89, %v460
    %v462 = vadd.f32 %v456, %v461
    %v463 = vadd.f32 %v457, %v461
    %vm464 = vcmask 130048
    %v465 = vsel %vm464, %v462, 0.0
    %466 = vadd.xlane.f32.xlu0 %v465
    %v467 = vpop.xlane.xlu0 %466
    %v468 = vsel %vm464, %v463, 0.0
    %469 = vadd.xlane.f32.xlu0 %v468
    %v470 = vpop.xlane.xlu0 %469
    %v471 = vlaneseq
    %v472 = vand.u32 %v471, 127
    %vm473 = vcmp.eq.s32.totalorder %v472, 16
    %v474 = vsel %vm473, %v467, %v440
    %v475 = vsel %vm473, %v470, %v443
    %476 = vst.msk [vmem:[%s4] sm:$0xff] %vm113, %v474
    %477 = vst.msk [vmem:[%s4 + $0x8] sm:$0xff] %vm113, %v475
    // Predicated region
    $region22: #{run_model.1} parent=1 // pred_check
      _
    $region23: #{run_model.1} parent=1 // pred_check_branch
      %479 = sbr.rel (0) target = $region25
    $region24: #{run_model.1} parent=1 // pred_region
      _
    $region25: #{run_model.1} parent=1 // pred_fallthru
      _
    // Predicated region
    $region26: #{run_model.1} parent=1 // pred_check
      _
    $region27: #{run_model.1} parent=1 // pred_check_branch
      %481 = sbr.rel (0) target = $region29
    $region28: #{run_model.1} parent=1 // pred_region
      _
    $region29: #{run_model.1} parent=1 // pred_fallthru
      _
    %482 = vsyncpa [#allocation3], 1

</llo_original>
